<compile_context>
chip_gen: v5e
topology: v5e:2x2
jax: 0.10.0
libtpu: 0.0.40
codegen_flags: <defaults>
</compile_context>

<pallas_src>
import functools
import math

import jax
import jax.numpy as jnp
from jax import lax
from jax.experimental import pallas as pl
from jax.experimental.pallas import tpu as pltpu

_LANE = 128
_NEG_BIG = -1e30  # finite "minus infinity": avoids NaN in exp(m_prev - m_new)


def _round_up(x, m):
    return ((x + m - 1) // m) * m


def _sdpa_flash_kernel(q_ref, k_ref, v_ref, o_ref, m_sc, l_sc, acc_sc, qs_sc,
                       *, scale, kv_len, tk, mask_kv):
    """One (batch-block, q-tile, k-tile) step of online-softmax attention.

    q_ref: (Bb, tq, Dp)   k_ref: (Bb, tk, Dp)   v_ref: (Bb, tk, Dvp)
    o_ref: (Bb, tq, Dvp)
    scratch: m/l (Bb, tq, 1) f32, acc (Bb, tq, Dvp) f32, qs (Bb, tq, Dp) input dtype
    """
    ki = pl.program_id(2)

    @pl.when(ki == 0)
    def _init():
        m_sc[...] = jnp.full(m_sc.shape, _NEG_BIG, dtype=m_sc.dtype)
        l_sc[...] = jnp.zeros(l_sc.shape, dtype=l_sc.dtype)
        acc_sc[...] = jnp.zeros(acc_sc.shape, dtype=acc_sc.dtype)
        # Q block is resident across all ki iterations: scale it exactly once.
        qs_sc[...] = (q_ref[...].astype(jnp.float32) * scale).astype(qs_sc.dtype)

    q = qs_sc[...]
    k = k_ref[...]
    v = v_ref[...]

    # Batched Q K^T: contract the head dims directly — no .T / XLU transpose.
    s = jnp.einsum("bqd,bkd->bqk", q, k,
                   preferred_element_type=jnp.float32)          # (Bb, tq, tk)

    if mask_kv:  # static Python bool — only emitted when Sk was padded
        kv_ids = ki * tk + lax.broadcasted_iota(jnp.int32, s.shape, 2)
        s = jnp.where(kv_ids < kv_len, s, _NEG_BIG)

    # Online softmax update (statistics in f32).
    m_prev = m_sc[...]
    m_new = jnp.maximum(m_prev, jnp.max(s, axis=-1, keepdims=True))
    alpha = jnp.exp(m_prev - m_new)
    p = jnp.exp(s - m_new)                                      # un-normalized probs

    l_sc[...] = alpha * l_sc[...] + jnp.sum(p, axis=-1, keepdims=True)
    acc_sc[...] = alpha * acc_sc[...] + jnp.einsum(
        "bqk,bkd->bqd", p.astype(v.dtype), v,
        preferred_element_type=jnp.float32)                     # (Bb, tq, Dvp)
    m_sc[...] = m_new

    # dropout with p = 0.0 is the identity.

    @pl.when(ki == pl.num_programs(2) - 1)
    def _finalize():
        # Normalize the (small) output block instead of the (large) score block;
        # approx reciprocal runs on the otherwise-idle EUP slot.
        inv_l = pl.reciprocal(l_sc[...], approx=True)
        o_ref[...] = (acc_sc[...] * inv_l).astype(o_ref.dtype)


def _pick_block_b(B, parallel_q_steps, tq, tk, d_p, dv_p, itemsize,
                  budget_bytes, max_block_b=8):
    """Batch-block size: fit VMEM budget, cap small, keep the parallel grid >= 2."""
    per_b = (
        2 * 2 * (tq * d_p + tk * d_p + tk * dv_p + tq * dv_p) * itemsize  # 2x-buffered I/O
        + 3 * tq * tk * 4                                                 # s, p, exp temps
        + (2 * tq + tq * dv_p) * 4                                        # m, l, acc scratch
        + tq * d_p * itemsize                                             # scaled-Q scratch
    )
    bb = max(1, min(max_block_b, B, budget_bytes // max(per_b, 1)))
    while B % bb:
        bb -= 1
    # Megacore (v7x has 2 TCs): keep at least 2 steps on the parallel axes.
    while bb > 1 and (B // bb) * parallel_q_steps < 2:
        bb -= 1
        while B % bb:
            bb -= 1
    return bb


def sdpa(query, key, value, dropout_p: float = 0.0,
         tq_target: int = 256, tk_target: int = 256,
         vmem_budget_bytes: int = 8 << 20):
    assert dropout_p == 0.0, "dropout treated as identity (see TODO above)"
    B, Sq, Dq = query.shape
    Bk, Sk, Dk = key.shape
    Bv, Sv, Dv = value.shape
    assert B == Bk == Bv and Sk == Sv and Dq == Dk

    # Reference module's scale: 1/(sqrt(d_q)*sqrt(d_k)).
    scale = 1.0 / (math.sqrt(Dq) * math.sqrt(Dk))

    itemsize = jnp.dtype(query.dtype).itemsize
    sublane = {4: 8, 2: 16, 1: 32}.get(itemsize, 8)

    # Lane-dense head dims (zero pad; exact for QK^T, padded output cols sliced off).
    d_p = _round_up(Dq, _LANE)
    dv_p = _round_up(Dv, _LANE)

    # tq: multiple of the dtype sublane; tk: multiple of 128 (lane dim of score block).
    tq = min(_round_up(Sq, sublane), _round_up(tq_target, sublane))
    tk = min(_round_up(Sk, _LANE), _round_up(tk_target, _LANE))
    sq_p = _round_up(Sq, tq)
    sk_p = _round_up(Sk, tk)
    mask_kv = sk_p != Sk   # padded key positions must be masked in-kernel

    q_p = query if (sq_p == Sq and d_p == Dq) else jnp.pad(
        query, ((0, 0), (0, sq_p - Sq), (0, d_p - Dq)))
    k_p = key if (sk_p == Sk and d_p == Dk) else jnp.pad(
        key, ((0, 0), (0, sk_p - Sk), (0, d_p - Dk)))
    v_p = value if (sk_p == Sk and dv_p == Dv) else jnp.pad(
        value, ((0, 0), (0, sk_p - Sk), (0, dv_p - Dv)))

    block_b = _pick_block_b(B, sq_p // tq, tq, tk, d_p, dv_p, itemsize,
                            vmem_budget_bytes)

    grid = (B // block_b, sq_p // tq, sk_p // tk)
    kernel = functools.partial(_sdpa_flash_kernel, scale=scale, kv_len=Sk,
                               tk=tk, mask_kv=mask_kv)

    out_p = pl.pallas_call(
        kernel,
        out_shape=jax.ShapeDtypeStruct((B, sq_p, dv_p), query.dtype),
        grid_spec=pltpu.PrefetchScalarGridSpec(
            num_scalar_prefetch=0,
            grid=grid,
            in_specs=[
                pl.BlockSpec((block_b, tq, d_p), lambda b, qi, ki: (b, qi, 0)),
                pl.BlockSpec((block_b, tk, d_p), lambda b, qi, ki: (b, ki, 0)),
                pl.BlockSpec((block_b, tk, dv_p), lambda b, qi, ki: (b, ki, 0)),
            ],
            out_specs=pl.BlockSpec((block_b, tq, dv_p),
                                   lambda b, qi, ki: (b, qi, 0)),
            scratch_shapes=[
                pltpu.VMEM((block_b, tq, 1), jnp.float32),     # running max m
                pltpu.VMEM((block_b, tq, 1), jnp.float32),     # running denom l
                pltpu.VMEM((block_b, tq, dv_p), jnp.float32),  # un-normalized acc
                pltpu.VMEM((block_b, tq, d_p), query.dtype),   # pre-scaled Q
            ],
        ),
        compiler_params=pltpu.CompilerParams(
            dimension_semantics=("parallel", "parallel", "arbitrary"),
            vmem_limit_bytes=32 << 20),
    )(q_p, k_p, v_p)

    return out_p[:, :Sq, :Dv]


def sdpa_reference(query, key, value):
    scale = 1.0 / (math.sqrt(query.shape[-1]) * math.sqrt(key.shape[-1]))
    qk = jnp.einsum("bqd,bkd->bqk", query, key) * scale
    p = jax.nn.softmax(qk, axis=-1)
    return jnp.einsum("bqk,bkd->bqd", p, value)


if __name__ == "__main__":
    key0 = jax.random.PRNGKey(0)
    kq, kk, kv = jax.random.split(key0, 3)

    B, Sq, Sk, D, Dv = 2, 16, 16, 8, 8
    q = jax.random.normal(kq, (B, Sq, D), dtype=jnp.float32)
    k = jax.random.normal(kk, (B, Sk, D), dtype=jnp.float32)
    v = jax.random.normal(kv, (B, Sk, Dv), dtype=jnp.float32)

    out = sdpa(q, k, v)
    out = jax.block_until_ready(out)

    ref = sdpa_reference(q, k, v)
    assert out.shape == (B, Sq, Dv)
    # approx=True reciprocal (EUP) trades a few low bits of precision for a free slot.
    assert jnp.allclose(out, ref, atol=2e-3, rtol=2e-3), "mismatch vs reference"

    print("KERNEL_OK")
</pallas_src>

<mosaic_0001>
module attributes {stable_mosaic.version = 11 : i64} {
  func.func @_sdpa_flash_kernel(%arg0: i32, %arg1: i32, %arg2: i32, %arg3: memref<1x16x128xf32, #tpu.memory_space<vmem>>, %arg4: memref<1x128x128xf32, #tpu.memory_space<vmem>>, %arg5: memref<1x128x128xf32, #tpu.memory_space<vmem>>, %arg6: memref<1x16x128xf32, #tpu.memory_space<vmem>>, %arg7: memref<1x16x1xf32, #tpu.memory_space<vmem>>, %arg8: memref<1x16x1xf32, #tpu.memory_space<vmem>>, %arg9: memref<1x16x128xf32, #tpu.memory_space<vmem>>, %arg10: memref<1x16x128xf32, #tpu.memory_space<vmem>>) attributes {dimension_semantics = [#tpu.dimension_semantics<parallel>, #tpu.dimension_semantics<parallel>, #tpu.dimension_semantics<arbitrary>], iteration_bounds = array<i64: 2, 1, 1>, scalar_prefetch = 0 : i64, scratch_operands = 4 : i64, tpu.core_type = #tpu.core_type<tc>, window_params = [{transform_indices = @transform_0, window_bounds = array<i64: 1, 16, 128>}, {transform_indices = @transform_1, window_bounds = array<i64: 1, 128, 128>}, {transform_indices = @transform_2, window_bounds = array<i64: 1, 128, 128>}, {transform_indices = @transform_3, window_bounds = array<i64: 1, 16, 128>}]} {
    %c0_i32 = arith.constant 0 : i32
    %0 = arith.cmpi eq, %arg2, %c0_i32 : i32
    %1 = arith.extui %0 : i1 to i32
    %c0_i32_0 = arith.constant 0 : i32
    %2 = arith.cmpi ne, %1, %c0_i32_0 : i32
    scf.if %2 {
      %cst_33 = arith.constant -1.000000e+30 : f32
      %40 = vector.broadcast %cst_33 : f32 to vector<1x16x1xf32>
      %c0_34 = arith.constant 0 : index
      %c0_35 = arith.constant 0 : index
      %c0_36 = arith.constant 0 : index
      %41 = vector.load %arg7[%c0_34, %c0_35, %c0_36] : memref<1x16x1xf32, #tpu.memory_space<vmem>>, vector<1x16x1xf32>
      tpu.vector_store %arg7[%c0_34, %c0_35, %c0_36], %40 {strides = array<i32>} : memref<1x16x1xf32, #tpu.memory_space<vmem>>, vector<1x16x1xf32>,
      %cst_37 = arith.constant 0.000000e+00 : f32
      %42 = vector.broadcast %cst_37 : f32 to vector<1x16x1xf32>
      %c0_38 = arith.constant 0 : index
      %c0_39 = arith.constant 0 : index
      %c0_40 = arith.constant 0 : index
      %43 = vector.load %arg8[%c0_38, %c0_39, %c0_40] : memref<1x16x1xf32, #tpu.memory_space<vmem>>, vector<1x16x1xf32>
      tpu.vector_store %arg8[%c0_38, %c0_39, %c0_40], %42 {strides = array<i32>} : memref<1x16x1xf32, #tpu.memory_space<vmem>>, vector<1x16x1xf32>,
      %cst_41 = arith.constant 0.000000e+00 : f32
      %44 = vector.broadcast %cst_41 : f32 to vector<1x16x128xf32>
      %c0_42 = arith.constant 0 : index
      %c0_43 = arith.constant 0 : index
      %c0_44 = arith.constant 0 : index
      %45 = vector.load %arg9[%c0_42, %c0_43, %c0_44] : memref<1x16x128xf32, #tpu.memory_space<vmem>>, vector<1x16x128xf32>
      tpu.vector_store %arg9[%c0_42, %c0_43, %c0_44], %44 {strides = array<i32>} : memref<1x16x128xf32, #tpu.memory_space<vmem>>, vector<1x16x128xf32>,
      %c0_45 = arith.constant 0 : index
      %c0_46 = arith.constant 0 : index
      %c0_47 = arith.constant 0 : index
      %46 = vector.load %arg3[%c0_45, %c0_46, %c0_47] : memref<1x16x128xf32, #tpu.memory_space<vmem>>, vector<1x16x128xf32>
      %cst_48 = arith.constant 1.250000e-01 : f32
      %47 = vector.broadcast %cst_48 : f32 to vector<1x16x128xf32>
      %48 = arith.mulf %46, %47 : vector<1x16x128xf32>
      %c0_49 = arith.constant 0 : index
      %c0_50 = arith.constant 0 : index
      %c0_51 = arith.constant 0 : index
      %49 = vector.load %arg10[%c0_49, %c0_50, %c0_51] : memref<1x16x128xf32, #tpu.memory_space<vmem>>, vector<1x16x128xf32>
      tpu.vector_store %arg10[%c0_49, %c0_50, %c0_51], %48 {strides = array<i32>} : memref<1x16x128xf32, #tpu.memory_space<vmem>>, vector<1x16x128xf32>,
    } else {
    }
    %c0 = arith.constant 0 : index
    %c0_1 = arith.constant 0 : index
    %c0_2 = arith.constant 0 : index
    %3 = vector.load %arg10[%c0, %c0_1, %c0_2] : memref<1x16x128xf32, #tpu.memory_space<vmem>>, vector<1x16x128xf32>
    %c0_3 = arith.constant 0 : index
    %c0_4 = arith.constant 0 : index
    %c0_5 = arith.constant 0 : index
    %4 = vector.load %arg4[%c0_3, %c0_4, %c0_5] : memref<1x128x128xf32, #tpu.memory_space<vmem>>, vector<1x128x128xf32>
    %c0_6 = arith.constant 0 : index
    %c0_7 = arith.constant 0 : index
    %c0_8 = arith.constant 0 : index
    %5 = vector.load %arg5[%c0_6, %c0_7, %c0_8] : memref<1x128x128xf32, #tpu.memory_space<vmem>>, vector<1x128x128xf32>
    "tpu.trace_start"() <{level = 10 : i32, message = "bqd,bkd->bqk"}> : () -> ()
    %cst = arith.constant dense<0.000000e+00> : vector<1x16x128xf32>
    %6 = tpu.matmul %3, %4, %cst {dimension_numbers = #tpu.dot_dimension_numbers<[2], [2], [1], [1], [0, 0, 0, 1, 1, 1], [0], [0]>} : vector<1x16x128xf32>, vector<1x128x128xf32>, vector<1x16x128xf32> -> vector<1x16x128xf32>
    "tpu.trace_stop"() : () -> ()
    %c128_i32 = arith.constant 128 : i32
    %7 = arith.muli %arg2, %c128_i32 : i32
    %8 = tpu.iota {dimensions = array<i32: 2>} : vector<1x16x128xi32>
    %9 = vector.broadcast %7 : i32 to vector<1x16x128xi32>
    %10 = arith.addi %9, %8 : vector<1x16x128xi32>
    %c16_i32 = arith.constant 16 : i32
    %11 = vector.broadcast %c16_i32 : i32 to vector<1x16x128xi32>
    %12 = arith.cmpi slt, %10, %11 : vector<1x16x128xi32>
    %cst_9 = arith.constant -1.000000e+30 : f32
    %13 = vector.broadcast %cst_9 : f32 to vector<1x16x128xf32>
    %14 = arith.select %12, %6, %13 : vector<1x16x128xi1>, vector<1x16x128xf32>
    %c0_10 = arith.constant 0 : index
    %c0_11 = arith.constant 0 : index
    %c0_12 = arith.constant 0 : index
    %15 = vector.load %arg7[%c0_10, %c0_11, %c0_12] : memref<1x16x1xf32, #tpu.memory_space<vmem>>, vector<1x16x1xf32>
    %cst_13 = arith.constant dense<0xFF800000> : vector<1x16xf32>
    %16 = vector.multi_reduction <maximumf>, %14, %cst_13 [2] : vector<1x16x128xf32> to vector<1x16xf32>
    %17 = vector.shape_cast %16 : vector<1x16xf32> to vector<1x16x1xf32>
    %18 = arith.maximumf %15, %17 : vector<1x16x1xf32>
    %19 = arith.subf %15, %18 : vector<1x16x1xf32>
    %20 = math.exp %19 : vector<1x16x1xf32>
    %21 = vector.broadcast %18 : vector<1x16x1xf32> to vector<1x16x128xf32>
    %22 = arith.subf %14, %21 : vector<1x16x128xf32>
    %23 = math.exp %22 : vector<1x16x128xf32>
    %c0_14 = arith.constant 0 : index
    %c0_15 = arith.constant 0 : index
    %c0_16 = arith.constant 0 : index
    %24 = vector.load %arg8[%c0_14, %c0_15, %c0_16] : memref<1x16x1xf32, #tpu.memory_space<vmem>>, vector<1x16x1xf32>
    %25 = arith.mulf %20, %24 : vector<1x16x1xf32>
    %cst_17 = arith.constant dense<0.000000e+00> : vector<1x16xf32>
    %26 = vector.multi_reduction <add>, %23, %cst_17 [2] : vector<1x16x128xf32> to vector<1x16xf32>
    %27 = vector.shape_cast %26 : vector<1x16xf32> to vector<1x16x1xf32>
    %28 = arith.addf %25, %27 : vector<1x16x1xf32>
    %c0_18 = arith.constant 0 : index
    %c0_19 = arith.constant 0 : index
    %c0_20 = arith.constant 0 : index
    %29 = vector.load %arg8[%c0_18, %c0_19, %c0_20] : memref<1x16x1xf32, #tpu.memory_space<vmem>>, vector<1x16x1xf32>
    tpu.vector_store %arg8[%c0_18, %c0_19, %c0_20], %28 {strides = array<i32>} : memref<1x16x1xf32, #tpu.memory_space<vmem>>, vector<1x16x1xf32>,
    %c0_21 = arith.constant 0 : index
    %c0_22 = arith.constant 0 : index
    %c0_23 = arith.constant 0 : index
    %30 = vector.load %arg9[%c0_21, %c0_22, %c0_23] : memref<1x16x128xf32, #tpu.memory_space<vmem>>, vector<1x16x128xf32>
    %31 = vector.broadcast %20 : vector<1x16x1xf32> to vector<1x16x128xf32>
    %32 = arith.mulf %31, %30 : vector<1x16x128xf32>
    "tpu.trace_start"() <{level = 10 : i32, message = "bqk,bkd->bqd"}> : () -> ()
    %cst_24 = arith.constant dense<0.000000e+00> : vector<1x16x128xf32>
    %33 = tpu.matmul %23, %5, %cst_24 {dimension_numbers = #tpu.dot_dimension_numbers<[2], [1], [1], [2], [0, 0, 0, 1, 1, 2], [0], [0]>} : vector<1x16x128xf32>, vector<1x128x128xf32>, vector<1x16x128xf32> -> vector<1x16x128xf32>
    "tpu.trace_stop"() : () -> ()
    %34 = arith.addf %32, %33 : vector<1x16x128xf32>
    %c0_25 = arith.constant 0 : index
    %c0_26 = arith.constant 0 : index
    %c0_27 = arith.constant 0 : index
    %35 = vector.load %arg9[%c0_25, %c0_26, %c0_27] : memref<1x16x128xf32, #tpu.memory_space<vmem>>, vector<1x16x128xf32>
    tpu.vector_store %arg9[%c0_25, %c0_26, %c0_27], %34 {strides = array<i32>} : memref<1x16x128xf32, #tpu.memory_space<vmem>>, vector<1x16x128xf32>,
    %c0_28 = arith.constant 0 : index
    %c0_29 = arith.constant 0 : index
    %c0_30 = arith.constant 0 : index
    %36 = vector.load %arg7[%c0_28, %c0_29, %c0_30] : memref<1x16x1xf32, #tpu.memory_space<vmem>>, vector<1x16x1xf32>
    tpu.vector_store %arg7[%c0_28, %c0_29, %c0_30], %18 {strides = array<i32>} : memref<1x16x1xf32, #tpu.memory_space<vmem>>, vector<1x16x1xf32>,
    %c0_i32_31 = arith.constant 0 : i32
    %37 = arith.cmpi eq, %arg2, %c0_i32_31 : i32
    %38 = arith.extui %37 : i1 to i32
    %c0_i32_32 = arith.constant 0 : i32
    %39 = arith.cmpi ne, %38, %c0_i32_32 : i32
    scf.if %39 {
      %c0_33 = arith.constant 0 : index
      %c0_34 = arith.constant 0 : index
      %c0_35 = arith.constant 0 : index
      %40 = vector.load %arg8[%c0_33, %c0_34, %c0_35] : memref<1x16x1xf32, #tpu.memory_space<vmem>>, vector<1x16x1xf32>
      %41 = tpu.reciprocal %40 {approx = true} : vector<1x16x1xf32> -> vector<1x16x1xf32>
      %c0_36 = arith.constant 0 : index
      %c0_37 = arith.constant 0 : index
      %c0_38 = arith.constant 0 : index
      %42 = vector.load %arg9[%c0_36, %c0_37, %c0_38] : memref<1x16x128xf32, #tpu.memory_space<vmem>>, vector<1x16x128xf32>
      %43 = vector.broadcast %41 : vector<1x16x1xf32> to vector<1x16x128xf32>
      %44 = arith.mulf %42, %43 : vector<1x16x128xf32>
      %c0_39 = arith.constant 0 : index
      %c0_40 = arith.constant 0 : index
      %c0_41 = arith.constant 0 : index
      %45 = vector.load %arg6[%c0_39, %c0_40, %c0_41] : memref<1x16x128xf32, #tpu.memory_space<vmem>>, vector<1x16x128xf32>
      tpu.vector_store %arg6[%c0_39, %c0_40, %c0_41], %44 {strides = array<i32>} : memref<1x16x128xf32, #tpu.memory_space<vmem>>, vector<1x16x128xf32>,
    } else {
    }
    return
  }
  func.func @transform_0(%arg0: i32, %arg1: i32, %arg2: i32) -> (i32, i32, i32) {
    %c0_i32 = arith.constant 0 : i32
    %c0_i32_0 = arith.constant 0 : i32
    return %arg0, %arg1, %c0_i32 : i32, i32, i32
  }
  func.func @transform_1(%arg0: i32, %arg1: i32, %arg2: i32) -> (i32, i32, i32) {
    %c0_i32 = arith.constant 0 : i32
    %c0_i32_0 = arith.constant 0 : i32
    return %arg0, %arg2, %c0_i32 : i32, i32, i32
  }
  func.func @transform_2(%arg0: i32, %arg1: i32, %arg2: i32) -> (i32, i32, i32) {
    %c0_i32 = arith.constant 0 : i32
    %c0_i32_0 = arith.constant 0 : i32
    return %arg0, %arg2, %c0_i32 : i32, i32, i32
  }
  func.func @transform_3(%arg0: i32, %arg1: i32, %arg2: i32) -> (i32, i32, i32) {
    %c0_i32 = arith.constant 0 : i32
    %c0_i32_0 = arith.constant 0 : i32
    return %arg0, %arg1, %c0_i32 : i32, i32, i32
  }
}

</mosaic_0001>

<llo_original>
// kernel: tpu_custom_call.1
$region0: #{tpu_custom_call.1}
  #allocation0 [shape = 'u32[]', space=smem, size = 0x4, offset = 0x4, fixed_abs, tag = 'smem constant byte address 0x4 - core index']
  #allocation1 [shape = 'u32[72,128]{1,0:T(1,128)}', space=vmem, size = 0x9000, scoped, tag = 'internal scratch']
  #allocation2 [shape = 'f32[1,16,1]{2,1,0:T(8,128)}', space=vmem, size = 0x2000, scoped, tag = 'scratch operand']
  #allocation3 [shape = 'f32[1,16,1]{2,1,0:T(8,128)}', space=vmem, size = 0x2000, scoped, tag = 'scratch operand']
  #allocation4 [shape = 'f32[1,16,128]{2,1,0:T(8,128)}', space=vmem, size = 0x2000, scoped, tag = 'scratch operand']
  #allocation5 [shape = 'f32[1,16,128]{2,1,0:T(8,128)}', space=vmem, size = 0x2000, scoped, tag = 'scratch operand']
  %s0 = inlined_call_operand.hbm [shape: f32[2,16,128], index: 0, kind: input, shape index: {}]
  %s1 = inlined_call_operand.hbm [shape: f32[2,128,128], index: 1, kind: input, shape index: {}]
  %s2 = inlined_call_operand.hbm [shape: f32[2,128,128], index: 2, kind: input, shape index: {}]
  %s3 = inlined_call_operand.hbm [shape: f32[2,16,128], index: 3, kind: output, shape index: {}]
  %s4 = sld [smem:[#allocation0]]
  $region65: #{tpu_custom_call.1} parent=0
    _
  %s6 = ssub.s32 1, %s4
  %s7 = scalar_select 0, %s6, %s4
  $region1: #{tpu_custom_call.1} parent=0
    #allocation6 [shape = 'u8[16384]{0}', space=vmem, size = 0x4000, scoped, tag = 'input window, operand 0']
    #allocation7 [shape = 's32[2]{0}', space=sflag, size = 0x8, scoped, tag = 'scoped memory for tpu_custom_call.1']
    #allocation8 [shape = 's32[2]{0}', space=sflag, size = 0x8, scoped, tag = 'scoped memory for tpu_custom_call.1']
    #allocation9 [shape = 'u8[131072]{0}', space=vmem, size = 0x20000, scoped, tag = 'input window, operand 1']
    #allocation10 [shape = 's32[2]{0}', space=sflag, size = 0x8, scoped, tag = 'scoped memory for tpu_custom_call.1']
    #allocation11 [shape = 'u8[131072]{0}', space=vmem, size = 0x20000, scoped, tag = 'input window, operand 2']
    #allocation12 [shape = 'u8[16384]{0}', space=vmem, size = 0x4000, scoped, tag = 'output window, operand 0']
    %8 = vsyncpa [#allocation7], 0
    %s9 = scalar_lea.sflag [#allocation7], 1
    %10 = vsyncpa %s9, 0
    %11 = vsyncpa [#allocation10], 0
    %s12 = scalar_lea.sflag [#allocation10], 1
    %13 = vsyncpa %s12, 0
    %14 = vsyncpa [#allocation8], 0
    %s15 = scalar_lea.sflag [#allocation8], 1
    %16 = vsyncpa %s15, 0
    loop: start=0, step=1, limit=4
    $region2: #{tpu_custom_call.1} parent=1 // loop_pre_header
      _
    $region3: #{tpu_custom_call.1} parent=1 // loop_header
      %s18 = sphi 0, %s22
      %p19 = scmp.ge.s32.totalorder %s18, 4
      %s25 = sphi 0, %s44
      %s26 = sphi 0, %s40
      %s27 = sphi 0, %s36
      %s28 = sphi 0, %s25
      %s29 = sphi 0, %s26
      %s30 = sphi 0, %s27
      %s31 = sphi 0, %s28
      %s32 = sphi 0, %s29
      %s33 = sphi 0, %s30
      %s49 = sphi 0, %s51
      %s52 = sphi 0, %s49
      %s53 = sphi 0, %s52
      %s69 = sphi 0, %s53
      %s77 = sphi 0, %s79
      %s80 = sphi 0, %s77
      %s81 = sphi 0, %s80
      %s97 = sphi 0, %s81
      %s105 = sphi 0, %s107
      %s108 = sphi 0, %s105
      %s109 = sphi 0, %s108
      %s125 = sphi 0, %s109
      %s133 = sphi 0, %s135
      %s136 = sphi 0, %s133
      %s137 = sphi 0, %s136
      %s153 = sphi 0, %s137
    $region4: #{tpu_custom_call.1} parent=1 // loop_header_branch
      %21 = sbr.rel (%p19) target = $region8
    $region5: #{tpu_custom_call.1} parent=1 // loop_body
      %s23 = ssub.s32 %s18, 1
      %s24 = ssub.s32 %s18, 2
      %s34 = sadd.s32 1, %s27
      %p35 = scmp.ge.s32.totalorder %s34, 1
      %s36 = scalar_select %p35, 0, %s34
      %s37 = sadd.s32 1, %s26
      %s38 = scalar_select %p35, %s37, %s26
      %p39 = scmp.ge.s32.totalorder %s38, 1
      %s40 = scalar_select %p39, 0, %s38
      %s41 = sadd.s32 1, %s25
      %s42 = scalar_select %p39, %s41, %s25
      %p43 = scmp.ge.s32.totalorder %s42, 2
      %s44 = scalar_select %p43, 0, %s42
      %s45 = ssub.s32 %s25, %s44
      %s46 = ssub.s32 %s26, %s40
      %s47 = sor.u32 %s45, %s46
      %p48 = scmp.eq.s32.totalorder %s47, 0
      %s50 = sadd.s32 %s49, 1
      %s51 = scalar_select %p48, %s49, %s50
      %p54 = pneg %p48
      %p55 = scmp.eq.s32.totalorder %s18, 1
      %p56 = por %p54, %p55
      %p57 = scmp.ne.s32.totalorder %s49, %s52
      %p58 = scmp.eq.s32.totalorder %s18, 0
      %p59 = por %p57, %p58
      %p60 = scmp.ne.s32.totalorder %s49, %s52
      %p61 = scmp.eq.s32.totalorder %s23, 1
      %p62 = por %p60, %p61
      %p63 = scmp.ne.s32.totalorder %s52, %s53
      %p64 = scmp.eq.s32.totalorder %s23, 0
      %p65 = por %p63, %p64
      %p66 = scmp.ne.s32.totalorder %s52, %s53
      %p67 = scmp.eq.s32.totalorder %s24, 1
      %p68 = por %p66, %p67
      %p70 = scmp.ne.s32.totalorder %s53, %s69
      %p71 = scmp.eq.s32.totalorder %s24, 0
      %p72 = por %p70, %p71
      %s73 = ssub.s32 %s25, %s44
      %s74 = ssub.s32 %s27, %s36
      %s75 = sor.u32 %s73, %s74
      %p76 = scmp.eq.s32.totalorder %s75, 0
      %s78 = sadd.s32 %s77, 1
      %s79 = scalar_select %p76, %s77, %s78
      %p82 = pneg %p76
      %p83 = scmp.eq.s32.totalorder %s18, 1
      %p84 = por %p82, %p83
      %p85 = scmp.ne.s32.totalorder %s77, %s80
      %p86 = scmp.eq.s32.totalorder %s18, 0
      %p87 = por %p85, %p86
      %p88 = scmp.ne.s32.totalorder %s77, %s80
      %p89 = scmp.eq.s32.totalorder %s23, 1
      %p90 = por %p88, %p89
      %p91 = scmp.ne.s32.totalorder %s80, %s81
      %p92 = scmp.eq.s32.totalorder %s23, 0
      %p93 = por %p91, %p92
      %p94 = scmp.ne.s32.totalorder %s80, %s81
      %p95 = scmp.eq.s32.totalorder %s24, 1
      %p96 = por %p94, %p95
      %p98 = scmp.ne.s32.totalorder %s81, %s97
      %p99 = scmp.eq.s32.totalorder %s24, 0
      %p100 = por %p98, %p99
      %s101 = ssub.s32 %s25, %s44
      %s102 = ssub.s32 %s27, %s36
      %s103 = sor.u32 %s101, %s102
      %p104 = scmp.eq.s32.totalorder %s103, 0
      %s106 = sadd.s32 %s105, 1
      %s107 = scalar_select %p104, %s105, %s106
      %p110 = pneg %p104
      %p111 = scmp.eq.s32.totalorder %s18, 1
      %p112 = por %p110, %p111
      %p113 = scmp.ne.s32.totalorder %s105, %s108
      %p114 = scmp.eq.s32.totalorder %s18, 0
      %p115 = por %p113, %p114
      %p116 = scmp.ne.s32.totalorder %s105, %s108
      %p117 = scmp.eq.s32.totalorder %s23, 1
      %p118 = por %p116, %p117
      %p119 = scmp.ne.s32.totalorder %s108, %s109
      %p120 = scmp.eq.s32.totalorder %s23, 0
      %p121 = por %p119, %p120
      %p122 = scmp.ne.s32.totalorder %s108, %s109
      %p123 = scmp.eq.s32.totalorder %s24, 1
      %p124 = por %p122, %p123
      %p126 = scmp.ne.s32.totalorder %s109, %s125
      %p127 = scmp.eq.s32.totalorder %s24, 0
      %p128 = por %p126, %p127
      %s129 = ssub.s32 %s25, %s44
      %s130 = ssub.s32 %s26, %s40
      %s131 = sor.u32 %s129, %s130
      %p132 = scmp.eq.s32.totalorder %s131, 0
      %s134 = sadd.s32 %s133, 1
      %s135 = scalar_select %p132, %s133, %s134
      %p138 = pneg %p132
      %p139 = scmp.eq.s32.totalorder %s18, 1
      %p140 = por %p138, %p139
      %p141 = scmp.ne.s32.totalorder %s133, %s136
      %p142 = scmp.eq.s32.totalorder %s18, 0
      %p143 = por %p141, %p142
      %p144 = scmp.ne.s32.totalorder %s133, %s136
      %p145 = scmp.eq.s32.totalorder %s23, 1
      %p146 = por %p144, %p145
      %p147 = scmp.ne.s32.totalorder %s136, %s137
      %p148 = scmp.eq.s32.totalorder %s23, 0
      %p149 = por %p147, %p148
      %p150 = scmp.ne.s32.totalorder %s136, %s137
      %p151 = scmp.eq.s32.totalorder %s24, 1
      %p152 = por %p150, %p151
      %p154 = scmp.ne.s32.totalorder %s137, %s153
      %p155 = scmp.eq.s32.totalorder %s24, 0
      %p156 = por %p154, %p155
      %p157 = scmp.le.s32.totalorder 1, %s18
      %p158 = scmp.lt.s32.totalorder %s18, 3
      %p159 = pnand %p157, %p158
      %p160 = pneg %p159
      // Predicated region
      $region9: #{tpu_custom_call.1} parent=5 // pred_check
        _
      $region10: #{tpu_custom_call.1} parent=5 // pred_check_branch
        %162 = sbr.rel (%p159) target = $region12
      $region11: #{tpu_custom_call.1} parent=5 // pred_region
        %s163 = ssub.s32 %s18, 1
      $region12: #{tpu_custom_call.1} parent=5 // pred_fallthru
        _
      %p164 = scmp.lt.s32.totalorder %s18, 2
      // Predicated region
      $region13: #{tpu_custom_call.1} parent=5 // pred_check
        %p165 = pneg %p164
      $region14: #{tpu_custom_call.1} parent=5 // pred_check_branch
        %167 = sbr.rel (%p165) target = $region16
      $region15: #{tpu_custom_call.1} parent=5 // pred_region
        // Predicated region
        $region17: #{tpu_custom_call.1} parent=15 // pred_check
          %p168 = pneg %p59
        $region18: #{tpu_custom_call.1} parent=15 // pred_check_branch
          %170 = sbr.rel (%p168) target = $region20
        $region19: #{tpu_custom_call.1} parent=15 // pred_region
          %s171 = sand.u32 %s49, 1
          %s172 = scalar_lea.sflag [#allocation7], %s171
          %s173 = sand.u32 %s49, 1
          %s174 = smul.addr %s173, 16
          %s175 = scalar_lea.vmem [#allocation6], %s174
          %s176 = smul.u32 2, %s26
          %178 = vsyncadd %s172, 0
          %s179 = smul.addr %s25, 2
          %s180 = sadd.s32 %s176, %s179
          %s181 = smul.addr %s180, 8
          %s182 = scalar_lea.hbm %s0, %s181
          %s183 = sshll.u32 %s182, 4
          %s184 = int_to_ptr.hbm [resolvable:$true] %s183
          %s185 = sshll.u32 %s175, 4
          %s186 = int_to_ptr.vmem [resolvable:$true] %s185
          %191 = dma.hbm_to_vmem [thread:$0]  %s184, 256, %s186, %s172, 128, 128, 8
        $region20: #{tpu_custom_call.1} parent=15 // pred_fallthru
          _
        // Predicated region
        $region21: #{tpu_custom_call.1} parent=15 // pred_check
          %p192 = pneg %p87
        $region22: #{tpu_custom_call.1} parent=15 // pred_check_branch
          %194 = sbr.rel (%p192) target = $region24
        $region23: #{tpu_custom_call.1} parent=15 // pred_region
          %s195 = sand.u32 %s18, 1
          %s196 = scalar_lea.sflag [#allocation10], %s195
          %s197 = sand.u32 %s77, 1
          %s198 = smul.addr %s197, 128
          %s199 = scalar_lea.vmem [#allocation9], %s198
          %s200 = smul.u32 16, %s27
          %202 = vsyncadd %s196, 0
          %s203 = smul.addr %s25, 16
          %s204 = sadd.s32 %s200, %s203
          %s205 = smul.addr %s204, 8
          %s206 = scalar_lea.hbm %s1, %s205
          %s207 = sshll.u32 %s206, 4
          %s208 = int_to_ptr.hbm [resolvable:$true] %s207
          %s209 = sshll.u32 %s199, 4
          %s210 = int_to_ptr.vmem [resolvable:$true] %s209
          %215 = dma.hbm_to_vmem [thread:$0]  %s208, 2048, %s210, %s196, 128, 128, 8
        $region24: #{tpu_custom_call.1} parent=15 // pred_fallthru
          _
        // Predicated region
        $region25: #{tpu_custom_call.1} parent=15 // pred_check
          %p216 = pneg %p115
        $region26: #{tpu_custom_call.1} parent=15 // pred_check_branch
          %218 = sbr.rel (%p216) target = $region28
        $region27: #{tpu_custom_call.1} parent=15 // pred_region
          %s219 = sand.u32 %s18, 1
          %s220 = scalar_lea.sflag [#allocation10], %s219
          %s221 = sand.u32 %s105, 1
          %s222 = smul.addr %s221, 128
          %s223 = scalar_lea.vmem [#allocation11], %s222
          %s224 = smul.u32 16, %s27
          %226 = vsyncadd %s220, 0
          %s227 = smul.addr %s25, 16
          %s228 = sadd.s32 %s224, %s227
          %s229 = smul.addr %s228, 8
          %s230 = scalar_lea.hbm %s2, %s229
          %s231 = sshll.u32 %s230, 4
          %s232 = int_to_ptr.hbm [resolvable:$true] %s231
          %s233 = sshll.u32 %s223, 4
          %s234 = int_to_ptr.vmem [resolvable:$true] %s233
          %239 = dma.hbm_to_vmem [thread:$0]  %s232, 2048, %s234, %s220, 128, 128, 8
        $region28: #{tpu_custom_call.1} parent=15 // pred_fallthru
          _
      $region16: #{tpu_custom_call.1} parent=5 // pred_fallthru
        _
      %p240 = scmp.le.s32.totalorder 1, %s18
      %p241 = scmp.lt.s32.totalorder %s18, 3
      %p242 = pnand %p240, %p241
      %p243 = pneg %p242
      // Predicated region
      $region29: #{tpu_custom_call.1} parent=5 // pred_check
        _
      $region30: #{tpu_custom_call.1} parent=5 // pred_check_branch
        %245 = sbr.rel (%p242) target = $region32
      $region31: #{tpu_custom_call.1} parent=5 // pred_region
        %s246 = ssub.s32 %s18, 1
        %s247 = sand.u32 %s52, 1
        %s248 = scalar_lea.sflag [#allocation7], %s247
        %s249 = sand.u32 %s52, 1
        %s250 = smul.addr %s249, 16
        %s251 = scalar_lea.vmem [#allocation6], %s250
        // Predicated region
        $region33: #{tpu_custom_call.1} parent=31 // pred_check
          %p252 = pneg %p65
        $region34: #{tpu_custom_call.1} parent=31 // pred_check_branch
          %254 = sbr.rel (%p252) target = $region36
        $region35: #{tpu_custom_call.1} parent=31 // pred_region
          %256 = dma.done %s248, 256
        $region36: #{tpu_custom_call.1} parent=31 // pred_fallthru
          _
        %s257 = sand.u32 %s23, 1
        %s258 = scalar_lea.sflag [#allocation10], %s257
        %s259 = sand.u32 %s80, 1
        %s260 = smul.addr %s259, 128
        %s261 = scalar_lea.vmem [#allocation9], %s260
        // Predicated region
        $region37: #{tpu_custom_call.1} parent=31 // pred_check
          %p262 = pneg %p93
        $region38: #{tpu_custom_call.1} parent=31 // pred_check_branch
          %264 = sbr.rel (%p262) target = $region40
        $region39: #{tpu_custom_call.1} parent=31 // pred_region
          %266 = dma.done %s258, 2048
        $region40: #{tpu_custom_call.1} parent=31 // pred_fallthru
          _
        %s267 = sand.u32 %s23, 1
        %s268 = scalar_lea.sflag [#allocation10], %s267
        %s269 = sand.u32 %s108, 1
        %s270 = smul.addr %s269, 128
        %s271 = scalar_lea.vmem [#allocation11], %s270
        // Predicated region
        $region41: #{tpu_custom_call.1} parent=31 // pred_check
          %p272 = pneg %p121
        $region42: #{tpu_custom_call.1} parent=31 // pred_check_branch
          %274 = sbr.rel (%p272) target = $region44
        $region43: #{tpu_custom_call.1} parent=31 // pred_region
          %276 = dma.done %s268, 2048
        $region44: #{tpu_custom_call.1} parent=31 // pred_fallthru
          _
        %s277 = sand.u32 %s52, 1
        %s278 = scalar_lea.sflag [#allocation7], %s277
        %s279 = sand.u32 %s52, 1
        %s280 = smul.addr %s279, 16
        %s281 = scalar_lea.vmem [#allocation6], %s280
        %p282 = pneg %p65
        %p283 = pneg %p62
        %s284 = sand.u32 %s23, 1
        %s285 = scalar_lea.sflag [#allocation10], %s284
        %s286 = sand.u32 %s80, 1
        %s287 = smul.addr %s286, 128
        %s288 = scalar_lea.vmem [#allocation9], %s287
        %p289 = pneg %p93
        %p290 = pneg %p90
        %s291 = sand.u32 %s23, 1
        %s292 = scalar_lea.sflag [#allocation10], %s291
        %s293 = sand.u32 %s108, 1
        %s294 = smul.addr %s293, 128
        %s295 = scalar_lea.vmem [#allocation11], %s294
        %p296 = pneg %p121
        %p297 = pneg %p118
        %p298 = pneg %p149
        %p299 = pneg %p146
        %s300 = sand.u32 %s136, 1
        %s301 = scalar_lea.sflag [#allocation8], %s300
        %s302 = sand.u32 %s136, 1
        %s303 = smul.addr %s302, 16
        %s304 = scalar_lea.vmem [#allocation12], %s303
        %s305 = smul.u32 2, %s29
        %s306 = smul.u32 16, %s30
        %s307 = smul.u32 16, %s30
        %s308 = smul.u32 2, %s29
        %p309 = scmp.eq.s32.totalorder %s30, 0
        // Predicated region
        $region45: #{tpu_custom_call.1} parent=31 // pred_check
          %p310 = pneg %p309
        $region46: #{tpu_custom_call.1} parent=31 // pred_check_branch
          %312 = sbr.rel (%p310) target = $region48
        $region47: #{tpu_custom_call.1} parent=31 // pred_region
          %vm313 = vcmask 7168
          %314 = vst.msk [vmem:[#allocation2] sm:$0xff] %vm313, -1e+30
          %315 = vst.msk [vmem:[#allocation2 + $0x8] sm:$0xff] %vm313, -1e+30
          %316 = vst.msk [vmem:[#allocation3] sm:$0xff] %vm313, 0.0
          %317 = vst.msk [vmem:[#allocation3 + $0x8] sm:$0xff] %vm313, 0.0
          %318 = vst [vmem:[#allocation4] sm:$0xff] 0.0
          %319 = vst [vmem:[#allocation4 + $0x8] sm:$0xff] 0.0
          %v320 = vld [vmem:[%s251] sm:$0xff]
          %v321 = vld [vmem:[%s251 + $0x8] sm:$0xff]
          %v322 = vmul.f32 %v320, 0.125
          %v323 = vmul.f32 %v321, 0.125
          %324 = vst [vmem:[#allocation5] sm:$0xff] %v322
          %325 = vst [vmem:[#allocation5 + $0x8] sm:$0xff] %v323
        $region48: #{tpu_custom_call.1} parent=31 // pred_fallthru
          _
        %v326 = vld [vmem:[#allocation5] sm:$0xff]
        %v327 = vld [vmem:[#allocation5 + $0x8] sm:$0xff]
        %v328 = vld [vmem:[%s261] sm:$0xff]
        %v329 = vld [vmem:[%s261 + $0x8] sm:$0xff]
        %v330 = vld [vmem:[%s261 + $0x10] sm:$0xff]
        %v331 = vld [vmem:[%s261 + $0x18] sm:$0xff]
        %v332 = vld [vmem:[%s261 + $0x20] sm:$0xff]
        %v333 = vld [vmem:[%s261 + $0x28] sm:$0xff]
        %v334 = vld [vmem:[%s261 + $0x30] sm:$0xff]
        %v335 = vld [vmem:[%s261 + $0x38] sm:$0xff]
        %v336 = vld [vmem:[%s261 + $0x40] sm:$0xff]
        %v337 = vld [vmem:[%s261 + $0x48] sm:$0xff]
        %v338 = vld [vmem:[%s261 + $0x50] sm:$0xff]
        %v339 = vld [vmem:[%s261 + $0x58] sm:$0xff]
        %v340 = vld [vmem:[%s261 + $0x60] sm:$0xff]
        %v341 = vld [vmem:[%s261 + $0x68] sm:$0xff]
        %v342 = vld [vmem:[%s261 + $0x70] sm:$0xff]
        %v343 = vld [vmem:[%s261 + $0x78] sm:$0xff]
        %v344 = vld [vmem:[%s271] sm:$0xff]
        %v345 = vld [vmem:[%s271 + $0x8] sm:$0xff]
        %v346 = vld [vmem:[%s271 + $0x10] sm:$0xff]
        %v347 = vld [vmem:[%s271 + $0x18] sm:$0xff]
        %v348 = vld [vmem:[%s271 + $0x20] sm:$0xff]
        %v349 = vld [vmem:[%s271 + $0x28] sm:$0xff]
        %v350 = vld [vmem:[%s271 + $0x30] sm:$0xff]
        %v351 = vld [vmem:[%s271 + $0x38] sm:$0xff]
        %v352 = vld [vmem:[%s271 + $0x40] sm:$0xff]
        %v353 = vld [vmem:[%s271 + $0x48] sm:$0xff]
        %v354 = vld [vmem:[%s271 + $0x50] sm:$0xff]
        %v355 = vld [vmem:[%s271 + $0x58] sm:$0xff]
        %v356 = vld [vmem:[%s271 + $0x60] sm:$0xff]
        %v357 = vld [vmem:[%s271 + $0x68] sm:$0xff]
        %v358 = vld [vmem:[%s271 + $0x70] sm:$0xff]
        %v359 = vld [vmem:[%s271 + $0x78] sm:$0xff]
        %360 = vmatpush.xpose.msra.mxu0 %v343
        %361 = vmatpush.xpose.msra.mxu0 %v342
        %362 = vmatpush.xpose.msra.mxu0 %v341
        %363 = vmatpush.xpose.msra.mxu0 %v340
        %364 = vmatpush.xpose.msra.mxu0 %v339
        %365 = vmatpush.xpose.msra.mxu0 %v338
        %366 = vmatpush.xpose.msra.mxu0 %v337
        %367 = vmatpush.xpose.msra.mxu0 %v336
        %368 = vmatpush.xpose.msra.mxu0 %v335
        %369 = vmatpush.xpose.msra.mxu0 %v334
        %370 = vmatpush.xpose.msra.mxu0 %v333
        %371 = vmatpush.xpose.msra.mxu0 %v332
        %372 = vmatpush.xpose.msra.mxu0 %v331
        %373 = vmatpush.xpose.msra.mxu0 %v330
        %374 = vmatpush.xpose.msra.mxu0 %v329
        %375 = vmatpush.xpose.msra.mxu0 %v328
        %376 = vmatmul.f32.gmra.mxu0 %v326
        %v377 = vpop.f32.mrf.mxu0
        %v378 = vadd.f32 0.0, %v377
        %379 = vmatmul.f32.gmra.mxu0 %v327
        %v380 = vpop.f32.mrf.mxu0
        %v381 = vadd.f32 0.0, %v380
        %382 = vdwg.mxu0
        %s383 = smul.u32 %s30, 128
        %v384 = vlaneseq
        %v385 = vand.u32 %v384, 127
        %v386 = vstv %s383
        %v387 = vadd.s32 %v386, %v385
        %vm388 = vcmp.lt.s32.totalorder %v387, 16
        %v389 = vsel %vm388, %v378, -1e+30
        %v390 = vsel %vm388, %v381, -1e+30
        %v391 = vld [vmem:[#allocation2] sm:$0xff]
        %v392 = vld [vmem:[#allocation2 + $0x8] sm:$0xff]
        %393 = vmax.xlane.f32.xlu0 %v389
        %v394 = vpop.xlane.xlu0 %393
        %395 = vmax.xlane.f32.xlu0 %v390
        %v396 = vpop.xlane.xlu0 %395
        %v397 = vmax.f32 %v391, %v394
        %v398 = vmax.f32 %v392, %v396
        %v399 = vsub.f32 %v391, %v397
        %v400 = vsub.f32 %v392, %v398
        %v401 = vmul.f32 %v399, 1.442695
        %v402 = vpow.pop %v401
        %v403 = vmul.f32 %v400, 1.442695
        %v404 = vpow.pop %v403
        %406 = vset.pattern.permute.xlu0 0
        %407 = vperm.xlu0 %406, %v397
        %v408 = vpop.permute.xlu0 %407
        %411 = vset.pattern.permute.xlu0 0
        %412 = vperm.xlu0 %411, %v398
        %v413 = vpop.permute.xlu0 %412
        %v415 = vsub.f32 %v389, %v408
        %v416 = vsub.f32 %v390, %v413
        %v417 = vmul.f32 %v415, 1.442695
        %v418 = vpow.pop %v417
        %v419 = vmul.f32 %v416, 1.442695
        %v420 = vpow.pop %v419
        %v421 = vld [vmem:[#allocation3] sm:$0xff]
        %v422 = vld [vmem:[#allocation3 + $0x8] sm:$0xff]
        %v423 = vmul.f32 %v402, %v421
        %v424 = vmul.f32 %v404, %v422
        %425 = vadd.xlane.f32.xlu0 %v418
        %v426 = vpop.xlane.xlu0 %425
        %427 = vadd.xlane.f32.xlu0 %v420
        %v428 = vpop.xlane.xlu0 %427
        %v429 = vadd.f32 %v423, %v426
        %v430 = vadd.f32 %v424, %v428
        %vm431 = vcmask 7168
        %432 = vst.msk [vmem:[#allocation3] sm:$0xff] %vm431, %v429
        %433 = vst.msk [vmem:[#allocation3 + $0x8] sm:$0xff] %vm431, %v430
        %v434 = vld [vmem:[#allocation4] sm:$0xff]
        %v435 = vld [vmem:[#allocation4 + $0x8] sm:$0xff]
        %437 = vset.pattern.permute.xlu0 0
        %438 = vperm.xlu0 %437, %v402
        %v439 = vpop.permute.xlu0 %438
        %442 = vset.pattern.permute.xlu0 0
        %443 = vperm.xlu0 %442, %v404
        %v444 = vpop.permute.xlu0 %443
        %v446 = vmul.f32 %v439, %v434
        %v447 = vmul.f32 %v444, %v435
        %448 = vmatpush.msra.mxu0 %v359
        %449 = vmatpush.msra.mxu0 %v358
        %450 = vmatpush.msra.mxu0 %v357
        %451 = vmatpush.msra.mxu0 %v356
        %452 = vmatpush.msra.mxu0 %v355
        %453 = vmatpush.msra.mxu0 %v354
        %454 = vmatpush.msra.mxu0 %v353
        %455 = vmatpush.msra.mxu0 %v352
        %456 = vmatpush.msra.mxu0 %v351
        %457 = vmatpush.msra.mxu0 %v350
        %458 = vmatpush.msra.mxu0 %v349
        %459 = vmatpush.msra.mxu0 %v348
        %460 = vmatpush.msra.mxu0 %v347
        %461 = vmatpush.msra.mxu0 %v346
        %462 = vmatpush.msra.mxu0 %v345
        %463 = vmatpush.msra.mxu0 %v344
        %464 = vmatmul.f32.gmra.mxu0 %v418
        %v465 = vpop.f32.mrf.mxu0
        %v466 = vadd.f32 0.0, %v465
        %467 = vmatmul.f32.gmra.mxu0 %v420
        %v468 = vpop.f32.mrf.mxu0
        %v469 = vadd.f32 0.0, %v468
        %470 = vdwg.mxu0
        %v471 = vadd.f32 %v446, %v466
        %v472 = vadd.f32 %v447, %v469
        %473 = vst [vmem:[#allocation4] sm:$0xff] %v471
        %474 = vst [vmem:[#allocation4 + $0x8] sm:$0xff] %v472
        %475 = vst.msk [vmem:[#allocation2] sm:$0xff] %vm431, %v397
        %476 = vst.msk [vmem:[#allocation2 + $0x8] sm:$0xff] %vm431, %v398
        // Predicated region
        $region49: #{tpu_custom_call.1} parent=31 // pred_check
          %p477 = pneg %p309
        $region50: #{tpu_custom_call.1} parent=31 // pred_check_branch
          %479 = sbr.rel (%p477) target = $region52
        $region51: #{tpu_custom_call.1} parent=31 // pred_region
          %v480 = vld [vmem:[#allocation3] sm:$0xff]
          %v481 = vld [vmem:[#allocation3 + $0x8] sm:$0xff]
          %v482 = vrcp.pop %v480
          %v483 = vrcp.pop %v481
          %v484 = vld [vmem:[#allocation4] sm:$0xff]
          %v485 = vld [vmem:[#allocation4 + $0x8] sm:$0xff]
          %487 = vset.pattern.permute.xlu0 0
          %488 = vperm.xlu0 %487, %v482
          %v489 = vpop.permute.xlu0 %488
          %492 = vset.pattern.permute.xlu0 0
          %493 = vperm.xlu0 %492, %v483
          %v494 = vpop.permute.xlu0 %493
          %v496 = vmul.f32 %v484, %v489
          %v497 = vmul.f32 %v485, %v494
          %498 = vst [vmem:[%s304] sm:$0xff] %v496
          %499 = vst [vmem:[%s304 + $0x8] sm:$0xff] %v497
        $region52: #{tpu_custom_call.1} parent=31 // pred_fallthru
          _
        %s500 = sand.u32 %s136, 1
        %s501 = scalar_lea.sflag [#allocation8], %s500
        %s502 = sand.u32 %s136, 1
        %s503 = smul.addr %s502, 16
        %s504 = scalar_lea.vmem [#allocation12], %s503
        // Predicated region
        $region53: #{tpu_custom_call.1} parent=31 // pred_check
          %p505 = pneg %p146
        $region54: #{tpu_custom_call.1} parent=31 // pred_check_branch
          %507 = sbr.rel (%p505) target = $region56
        $region55: #{tpu_custom_call.1} parent=31 // pred_region
          %s508 = smul.u32 2, %s29
          %510 = vsyncadd %s501, 0
          %s511 = smul.addr %s28, 2
          %s512 = sadd.s32 %s508, %s511
          %s513 = smul.addr %s512, 8
          %s514 = scalar_lea.hbm %s3, %s513
          %s515 = sshll.u32 %s504, 4
          %s516 = int_to_ptr.vmem [resolvable:$true] %s515
          %s517 = sshll.u32 %s514, 4
          %s518 = int_to_ptr.hbm [resolvable:$true] %s517
          %523 = dma.vmem_to_hbm [thread:$0]  %s516, 256, %s518, %s501, 128, 128, 8
        $region56: #{tpu_custom_call.1} parent=31 // pred_fallthru
          _
      $region32: #{tpu_custom_call.1} parent=5 // pred_fallthru
        _
      %p524 = scmp.le.s32.totalorder 2, %s18
      // Predicated region
      $region57: #{tpu_custom_call.1} parent=5 // pred_check
        %p525 = pneg %p524
      $region58: #{tpu_custom_call.1} parent=5 // pred_check_branch
        %527 = sbr.rel (%p525) target = $region60
      $region59: #{tpu_custom_call.1} parent=5 // pred_region
        %s528 = ssub.s32 %s18, 2
        // Predicated region
        $region61: #{tpu_custom_call.1} parent=59 // pred_check
          %p529 = pneg %p152
        $region62: #{tpu_custom_call.1} parent=59 // pred_check_branch
          %531 = sbr.rel (%p529) target = $region64
        $region63: #{tpu_custom_call.1} parent=59 // pred_region
          %s532 = sand.u32 %s137, 1
          %s533 = scalar_lea.sflag [#allocation8], %s532
          %s534 = sand.u32 %s137, 1
          %s535 = smul.addr %s534, 16
          %s536 = scalar_lea.vmem [#allocation12], %s535
          %538 = dma.done %s533, 256
        $region64: #{tpu_custom_call.1} parent=59 // pred_fallthru
          _
      $region60: #{tpu_custom_call.1} parent=5 // pred_fallthru
        _
    $region6: #{tpu_custom_call.1} parent=1 // loop_footer
      %s22 = sadd.s32 1, %s18
    $region7: #{tpu_custom_call.1} parent=1 // loop_footer_branch
      %17 = sbr.rel target = $region3
    $region8: #{tpu_custom_call.1} parent=1 // loop_exit
      _
    %539 = vsyncpa [#allocation7], 1
    %s540 = scalar_lea.sflag [#allocation7], 1
    %541 = vsyncpa %s540, 1
    %542 = vsyncpa [#allocation10], 1
    %s543 = scalar_lea.sflag [#allocation10], 1
    %544 = vsyncpa %s543, 1
    %545 = vsyncpa [#allocation8], 1
    %s546 = scalar_lea.sflag [#allocation8], 1
    %547 = vsyncpa %s546, 1

</llo_original>
